<compile_context>
chip_gen: v6e
topology: v6e:2x2x1
jax: 0.10.0
libtpu: 0.0.40
codegen_flags: <defaults>
</compile_context>

<pallas_src>
import jax
import jax.numpy as jnp
from jax.experimental import pallas as pl
from jax.experimental.pallas import tpu as pltpu


LN_EPS = 1e-5


# --------------------------------------------------------------------------- #
# Kernel: per-token LayerNorm (affine folded into W) + 1x1-conv matmul.
# --------------------------------------------------------------------------- #
def _merge_ln_conv_kernel(x_ref, w_ref, b_ref, o_ref):
    # x_ref : (tm, 4C)   token tile (input dtype, f32 or bf16)
    # w_ref : (4C, C2p)  gamma-folded 1x1-conv weight (same dtype as x)
    # b_ref : (1,  C2p)  beta-folded bias (f32)
    # o_ref : (tm, C2p)
    x = x_ref[...].astype(jnp.float32)
    mean = jnp.mean(x, axis=-1, keepdims=True)
    xc = x - mean
    var = jnp.mean(xc * xc, axis=-1, keepdims=True)
    xn = xc * jax.lax.rsqrt(var + LN_EPS)                       # (tm, 4C) f32
    y = jnp.dot(xn.astype(w_ref.dtype), w_ref[...],
                preferred_element_type=jnp.float32)             # MXU, f32 acc
    y = y + b_ref[...]                                          # folded beta
    o_ref[...] = y.astype(o_ref.dtype)


# --------------------------------------------------------------------------- #
# Tile-size / VMEM helpers.
# --------------------------------------------------------------------------- #
def _round_up(x, m):
    return ((x + m - 1) // m) * m


def _vmem_capacity_bytes(default=64 * 1024 * 1024):
    try:
        info = pltpu.get_tpu_info()
        return int(getattr(info, "vmem_capacity_bytes", default))
    except Exception:
        return default


def _select_tile_m(n_tokens, c4, c2p, act_bytes, vmem_budget):
    """Largest token tile that fits the VMEM budget (double-buffered I/O tiles
    plus the grid-invariant weight, conservatively counted twice)."""
    def footprint(tm):
        return (2 * tm * c4 * act_bytes        # input tile, double-buffered
                + 2 * tm * c2p * act_bytes     # output tile, double-buffered
                + 2 * c4 * c2p * act_bytes     # weight (x2 conservatively)
                + 2 * c2p * 4                  # bias (f32)
                + (1 << 20))                   # headroom for compiler scratch
    tm = 128
    for cand in (2048, 1024, 512, 256, 128):
        if footprint(cand) <= vmem_budget:
            tm = cand
            break
    if n_tokens <= tm:
        # Single tile covers everything; 16 keeps bf16 sublane tiling happy.
        tm = max(16, _round_up(n_tokens, 16))
    return tm


# --------------------------------------------------------------------------- #
# Wrapper.
# --------------------------------------------------------------------------- #
def patch_merging2d(x, gamma, beta, w_conv, *, out_nchw=True, tile_m=None):
    """x: (B, C, H, W).  Returns (B, 2C, H/2, W/2) (or NHWC if out_nchw=False)."""
    B, C, H, W = x.shape
    assert H % 2 == 0 and W % 2 == 0, "H and W must be even"
    Hp, Wp = H // 2, W // 2
    C4, C2 = 4 * C, 2 * C
    N = B * Hp * Wp

    # --- single-pass rearrange: NCHW -> token-major (N, 4C) with the exact
    #     [x0, x1, x2, x3] channel order of torch.cat in the module.
    #     x6[b,c,hp,dh,wp,dw] = x[b,c,2hp+dh,2wp+dw]; permuting to
    #     (b,hp,wp,dw,dh,c) and flattening gives chunks (dw,dh) =
    #     (0,0),(0,1),(1,0),(1,1) == x0,x1,x2,x3.
    tokens = jnp.transpose(
        x.reshape(B, C, Hp, 2, Wp, 2), (0, 2, 4, 5, 3, 1)).reshape(N, C4)

    # --- fold LayerNorm affine into the 1x1-conv weight / bias (exact):
    #   ((x-mu)*rsqrt(var+eps)*g + b) @ W
    #     == ((x-mu)*rsqrt(var+eps)) @ (g[:,None]*W)  +  (b @ W)
    w_t = jnp.transpose(w_conv[:, :, 0, 0], (1, 0)).astype(jnp.float32)  # (4C,2C)
    w_fold = gamma.astype(jnp.float32)[:, None] * w_t                    # (4C,2C)
    b_fold = beta.astype(jnp.float32)[None, :] @ w_t                     # (1, 2C)

    # Lane-dense output: pad tiny 2C up to 128 lanes (avoids masked vst).
    C2p = C2 if C2 >= 128 else 128
    if C2p != C2:
        w_fold = jnp.pad(w_fold, ((0, 0), (0, C2p - C2)))
        b_fold = jnp.pad(b_fold, ((0, 0), (0, C2p - C2)))

    compute_dtype = x.dtype                    # pass bf16 x to halve HBM traffic
    w_fold = w_fold.astype(compute_dtype)      # bias stays f32
    act_bytes = jnp.dtype(compute_dtype).itemsize

    # --- tile sizing / VMEM budget (per-chip; v7x has 64 MiB, v5e/v6e 128 MiB).
    vmem_cap = _vmem_capacity_bytes()
    vmem_limit = min(int(0.6 * vmem_cap), 96 * 1024 * 1024)
    tm = tile_m if tile_m is not None else _select_tile_m(
        N, C4, C2p, act_bytes, int(0.8 * vmem_limit))

    # Ragged token counts: pad instead of asserting divisibility.
    Np = _round_up(N, tm)
    if Np != N:
        tokens = jnp.pad(tokens, ((0, Np - N), (0, 0)))

    out = pl.pallas_call(
        _merge_ln_conv_kernel,
        out_shape=jax.ShapeDtypeStruct((Np, C2p), x.dtype),
        grid=(Np // tm,),
        in_specs=[
            pl.BlockSpec((tm, C4), lambda i: (i, 0)),     # tokens
            pl.BlockSpec((C4, C2p), lambda i: (0, 0)),    # folded weight (grid-invariant)
            pl.BlockSpec((1, C2p), lambda i: (0, 0)),     # folded bias  (grid-invariant)
        ],
        out_specs=pl.BlockSpec((tm, C2p), lambda i: (i, 0)),
        compiler_params=pltpu.CompilerParams(
            dimension_semantics=("parallel",),
            vmem_limit_bytes=vmem_limit,
        ),
    )(tokens, w_fold, b_fold)

    out = out[:N, :C2].reshape(B, Hp, Wp, C2)             # NHWC, no extra pass
    if out_nchw:
        # Kept only for parity with the PyTorch module's NCHW output; downstream
        # consumers that accept NHWC should pass out_nchw=False to skip this pass.
        out = jnp.transpose(out, (0, 3, 1, 2))
    return out


# --------------------------------------------------------------------------- #
# Pure-JAX reference of the PyTorch forward (correctness check).
# --------------------------------------------------------------------------- #
def _reference(x, gamma, beta, w_conv):
    x0 = x[:, :, 0::2, 0::2]
    x1 = x[:, :, 1::2, 0::2]
    x2 = x[:, :, 0::2, 1::2]
    x3 = x[:, :, 1::2, 1::2]
    xm = jnp.concatenate([x0, x1, x2, x3], axis=1).astype(jnp.float32)
    mean = jnp.mean(xm, axis=1, keepdims=True)
    var = jnp.mean((xm - mean) ** 2, axis=1, keepdims=True)
    xn = (xm - mean) / jnp.sqrt(var + LN_EPS)
    xn = xn * gamma[None, :, None, None] + beta[None, :, None, None]
    y = jnp.einsum("oi,bihw->bohw", w_conv[:, :, 0, 0].astype(jnp.float32), xn)
    return y


if __name__ == "__main__":
    B, dim, H, W = 2, 4, 16, 16          # input_resolution=(16,16), dim=4
    key = jax.random.PRNGKey(0)
    kx, kw, kg, kb = jax.random.split(key, 4)

    x = jax.random.normal(kx, (B, dim, H, W), dtype=jnp.float32)
    gamma = jnp.ones((4 * dim,), jnp.float32) + 0.1 * jax.random.normal(kg, (4 * dim,))
    beta = 0.1 * jax.random.normal(kb, (4 * dim,))
    w_conv = (jax.random.normal(kw, (2 * dim, 4 * dim, 1, 1), dtype=jnp.float32)
              / jnp.sqrt(4.0 * dim))

    ref = _reference(x, gamma, beta, w_conv)

    # f32 path: strict check against the pure-JAX reference.
    out = jax.block_until_ready(patch_merging2d(x, gamma, beta, w_conv))
    assert out.shape == (B, 2 * dim, H // 2, W // 2), out.shape
    max_err = float(jnp.max(jnp.abs(out.astype(jnp.float32) - ref)))
    assert jnp.allclose(out.astype(jnp.float32), ref, atol=1e-4, rtol=1e-4), max_err

    # bf16 I/O path (halves HBM traffic on this mem-bound op); loose tolerance.
    out_bf16 = jax.block_until_ready(
        patch_merging2d(x.astype(jnp.bfloat16), gamma, beta, w_conv))
    assert out_bf16.dtype == jnp.bfloat16
    max_err_bf16 = float(jnp.max(jnp.abs(out_bf16.astype(jnp.float32) - ref)))
    assert jnp.allclose(out_bf16.astype(jnp.float32), ref, atol=1e-1, rtol=1e-1), max_err_bf16

    print("KERNEL_OK")
</pallas_src>

<mosaic_0001>
module attributes {stable_mosaic.version = 11 : i64} {
  func.func @_merge_ln_conv_kernel(%arg0: i32, %arg1: memref<128x16xf32, #tpu.memory_space<vmem>>, %arg2: memref<16x128xf32, #tpu.memory_space<vmem>>, %arg3: memref<1x128xf32, #tpu.memory_space<vmem>>, %arg4: memref<128x128xf32, #tpu.memory_space<vmem>>) attributes {dimension_semantics = [#tpu.dimension_semantics<parallel>], iteration_bounds = array<i64: 1>, scalar_prefetch = 0 : i64, scratch_operands = 0 : i64, tpu.core_type = #tpu.core_type<tc>, window_params = [{transform_indices = @transform_0, window_bounds = array<i64: 128, 16>}, {pipeline_mode = #tpu.pipeline_mode<synchronous>, transform_indices = @transform_1, window_bounds = array<i64: 16, 128>}, {pipeline_mode = #tpu.pipeline_mode<synchronous>, transform_indices = @transform_2, window_bounds = array<i64: 1, 128>}, {transform_indices = @transform_3, window_bounds = array<i64: 128, 128>}]} {
    %c0 = arith.constant 0 : index
    %c0_0 = arith.constant 0 : index
    %0 = vector.load %arg1[%c0, %c0_0] : memref<128x16xf32, #tpu.memory_space<vmem>>, vector<128x16xf32>
    %cst = arith.constant dense<0.000000e+00> : vector<128xf32>
    %1 = vector.multi_reduction <add>, %0, %cst [1] : vector<128x16xf32> to vector<128xf32>
    %2 = vector.shape_cast %1 : vector<128xf32> to vector<128x1xf32>
    %cst_1 = arith.constant 1.600000e+01 : f32
    %3 = vector.broadcast %cst_1 : f32 to vector<128x1xf32>
    %4 = arith.divf %2, %3 : vector<128x1xf32>
    %5 = vector.broadcast %4 : vector<128x1xf32> to vector<128x16xf32>
    %6 = arith.subf %0, %5 : vector<128x16xf32>
    %7 = arith.mulf %6, %6 : vector<128x16xf32>
    %cst_2 = arith.constant dense<0.000000e+00> : vector<128xf32>
    %8 = vector.multi_reduction <add>, %7, %cst_2 [1] : vector<128x16xf32> to vector<128xf32>
    %9 = vector.shape_cast %8 : vector<128xf32> to vector<128x1xf32>
    %cst_3 = arith.constant 1.600000e+01 : f32
    %10 = vector.broadcast %cst_3 : f32 to vector<128x1xf32>
    %11 = arith.divf %9, %10 : vector<128x1xf32>
    %cst_4 = arith.constant 9.99999974E-6 : f32
    %12 = vector.broadcast %cst_4 : f32 to vector<128x1xf32>
    %13 = arith.addf %11, %12 : vector<128x1xf32>
    %14 = math.rsqrt %13 : vector<128x1xf32>
    %15 = vector.broadcast %14 : vector<128x1xf32> to vector<128x16xf32>
    %16 = arith.mulf %6, %15 : vector<128x16xf32>
    %c0_5 = arith.constant 0 : index
    %c0_6 = arith.constant 0 : index
    %17 = vector.load %arg2[%c0_5, %c0_6] : memref<16x128xf32, #tpu.memory_space<vmem>>, vector<16x128xf32>
    %cst_7 = arith.constant dense<0.000000e+00> : vector<128x128xf32>
    %18 = tpu.matmul %16, %17, %cst_7 {dimension_numbers = #tpu.dot_dimension_numbers<[1], [0], [0], [1], [0, 0, 1, 1], [], []>} : vector<128x16xf32>, vector<16x128xf32>, vector<128x128xf32> -> vector<128x128xf32>
    %c0_8 = arith.constant 0 : index
    %c0_9 = arith.constant 0 : index
    %19 = vector.load %arg3[%c0_8, %c0_9] : memref<1x128xf32, #tpu.memory_space<vmem>>, vector<1x128xf32>
    %20 = vector.broadcast %19 : vector<1x128xf32> to vector<128x128xf32>
    %21 = arith.addf %18, %20 : vector<128x128xf32>
    %c0_10 = arith.constant 0 : index
    %c0_11 = arith.constant 0 : index
    %22 = vector.load %arg4[%c0_10, %c0_11] : memref<128x128xf32, #tpu.memory_space<vmem>>, vector<128x128xf32>
    tpu.vector_store %arg4[%c0_10, %c0_11], %21 {strides = array<i32>} : memref<128x128xf32, #tpu.memory_space<vmem>>, vector<128x128xf32>,
    return
  }
  func.func @transform_0(%arg0: i32) -> (i32, i32) {
    %c0_i32 = arith.constant 0 : i32
    %c0_i32_0 = arith.constant 0 : i32
    return %arg0, %c0_i32 : i32, i32
  }
  func.func @transform_1(%arg0: i32) -> (i32, i32) {
    %c0_i32 = arith.constant 0 : i32
    %c0_i32_0 = arith.constant 0 : i32
    %c0_i32_1 = arith.constant 0 : i32
    return %c0_i32, %c0_i32_0 : i32, i32
  }
  func.func @transform_2(%arg0: i32) -> (i32, i32) {
    %c0_i32 = arith.constant 0 : i32
    %c0_i32_0 = arith.constant 0 : i32
    %c0_i32_1 = arith.constant 0 : i32
    return %c0_i32, %c0_i32_0 : i32, i32
  }
  func.func @transform_3(%arg0: i32) -> (i32, i32) {
    %c0_i32 = arith.constant 0 : i32
    %c0_i32_0 = arith.constant 0 : i32
    return %arg0, %c0_i32 : i32, i32
  }
}

</mosaic_0001>

<llo_original>
// kernel: tpu_custom_call.1
$region0: #{tpu_custom_call.1}
  #allocation0 [shape = 'u32[]', space=smem, size = 0x4, offset = 0x4, fixed_abs, tag = 'smem constant byte address 0x4 - core index']
  #allocation1 [shape = 'u32[144,128]{1,0:T(1,128)}', space=vmem, size = 0x12000, scoped, tag = 'internal scratch']
  %s0 = inlined_call_operand.vmem [shape: f32[128,16], index: 0, kind: input, shape index: {}]
  %s1 = inlined_call_operand.vmem [shape: f32[16,128], index: 1, kind: input, shape index: {}]
  %s2 = inlined_call_operand.vmem [shape: f32[1,128], index: 2, kind: input, shape index: {}]
  %s3 = inlined_call_operand.hbm [shape: f32[128,128], index: 3, kind: output, shape index: {}]
  %s4 = sld [smem:[#allocation0]]
  $region22: #{tpu_custom_call.1} parent=0
    _
  %s6 = ssub.s32 1, %s4
  %s7 = scalar_select 0, %s6, %s4
  $region1: #{tpu_custom_call.1} parent=0
    #allocation2 [shape = 'u8[65536]{0}', space=vmem, size = 0x10000, scoped, tag = 'output window, operand 0, single buffered']
    #allocation3 [shape = 's32[1]{0}', space=sflag, size = 0x4, scoped, tag = 'scoped memory for tpu_custom_call.1']
    %8 = vsyncpa [#allocation3], 0
    // Predicated region
    $region2: #{tpu_custom_call.1} parent=1 // pred_check
      _
    $region3: #{tpu_custom_call.1} parent=1 // pred_check_branch
      %10 = sbr.rel (0) target = $region5
    $region4: #{tpu_custom_call.1} parent=1 // pred_region
      _
    $region5: #{tpu_custom_call.1} parent=1 // pred_fallthru
      _
    // Predicated region
    $region6: #{tpu_custom_call.1} parent=1 // pred_check
      _
    $region7: #{tpu_custom_call.1} parent=1 // pred_check_branch
      %12 = sbr.rel (0) target = $region9
    $region8: #{tpu_custom_call.1} parent=1 // pred_region
      _
    $region9: #{tpu_custom_call.1} parent=1 // pred_fallthru
      _
    // Predicated region
    $region10: #{tpu_custom_call.1} parent=1 // pred_check
      _
    $region11: #{tpu_custom_call.1} parent=1 // pred_check_branch
      %14 = sbr.rel (0) target = $region13
    $region12: #{tpu_custom_call.1} parent=1 // pred_region
      _
    $region13: #{tpu_custom_call.1} parent=1 // pred_fallthru
      _
    %v15 = vld [vmem:[%s0] sm:$0xff]
    %v16 = vld [vmem:[%s0 + $0x8] sm:$0xff]
    %v17 = vld [vmem:[%s0 + $0x10] sm:$0xff]
    %v18 = vld [vmem:[%s0 + $0x18] sm:$0xff]
    %v19 = vld [vmem:[%s0 + $0x20] sm:$0xff]
    %v20 = vld [vmem:[%s0 + $0x28] sm:$0xff]
    %v21 = vld [vmem:[%s0 + $0x30] sm:$0xff]
    %v22 = vld [vmem:[%s0 + $0x38] sm:$0xff]
    %v23 = vld [vmem:[%s0 + $0x40] sm:$0xff]
    %v24 = vld [vmem:[%s0 + $0x48] sm:$0xff]
    %v25 = vld [vmem:[%s0 + $0x50] sm:$0xff]
    %v26 = vld [vmem:[%s0 + $0x58] sm:$0xff]
    %v27 = vld [vmem:[%s0 + $0x60] sm:$0xff]
    %v28 = vld [vmem:[%s0 + $0x68] sm:$0xff]
    %v29 = vld [vmem:[%s0 + $0x70] sm:$0xff]
    %v30 = vld [vmem:[%s0 + $0x78] sm:$0xff]
    %vm31 = vcmask 130048
    %v32 = vsel %vm31, %v15, 0.0
    %33 = vadd.xlane.f32.xlu0 %v32
    %v34 = vpop.xlane.xlu0 %33
    %v35 = vsel %vm31, %v16, 0.0
    %36 = vadd.xlane.f32.xlu0 %v35
    %v37 = vpop.xlane.xlu0 %36
    %v38 = vsel %vm31, %v17, 0.0
    %39 = vadd.xlane.f32.xlu0 %v38
    %v40 = vpop.xlane.xlu0 %39
    %v41 = vsel %vm31, %v18, 0.0
    %42 = vadd.xlane.f32.xlu0 %v41
    %v43 = vpop.xlane.xlu0 %42
    %v44 = vsel %vm31, %v19, 0.0
    %45 = vadd.xlane.f32.xlu0 %v44
    %v46 = vpop.xlane.xlu0 %45
    %v47 = vsel %vm31, %v20, 0.0
    %48 = vadd.xlane.f32.xlu0 %v47
    %v49 = vpop.xlane.xlu0 %48
    %v50 = vsel %vm31, %v21, 0.0
    %51 = vadd.xlane.f32.xlu0 %v50
    %v52 = vpop.xlane.xlu0 %51
    %v53 = vsel %vm31, %v22, 0.0
    %54 = vadd.xlane.f32.xlu0 %v53
    %v55 = vpop.xlane.xlu0 %54
    %v56 = vsel %vm31, %v23, 0.0
    %57 = vadd.xlane.f32.xlu0 %v56
    %v58 = vpop.xlane.xlu0 %57
    %v59 = vsel %vm31, %v24, 0.0
    %60 = vadd.xlane.f32.xlu0 %v59
    %v61 = vpop.xlane.xlu0 %60
    %v62 = vsel %vm31, %v25, 0.0
    %63 = vadd.xlane.f32.xlu0 %v62
    %v64 = vpop.xlane.xlu0 %63
    %v65 = vsel %vm31, %v26, 0.0
    %66 = vadd.xlane.f32.xlu0 %v65
    %v67 = vpop.xlane.xlu0 %66
    %v68 = vsel %vm31, %v27, 0.0
    %69 = vadd.xlane.f32.xlu0 %v68
    %v70 = vpop.xlane.xlu0 %69
    %v71 = vsel %vm31, %v28, 0.0
    %72 = vadd.xlane.f32.xlu0 %v71
    %v73 = vpop.xlane.xlu0 %72
    %v74 = vsel %vm31, %v29, 0.0
    %75 = vadd.xlane.f32.xlu0 %v74
    %v76 = vpop.xlane.xlu0 %75
    %v77 = vsel %vm31, %v30, 0.0
    %78 = vadd.xlane.f32.xlu0 %v77
    %v79 = vpop.xlane.xlu0 %78
    %v80 = vrcp.pop 16.0
    %v81 = vmul.f32 %v34, %v80
    %v82 = vmul.f32 %v37, %v80
    %v83 = vmul.f32 %v40, %v80
    %v84 = vmul.f32 %v43, %v80
    %v85 = vmul.f32 %v46, %v80
    %v86 = vmul.f32 %v49, %v80
    %v87 = vmul.f32 %v52, %v80
    %v88 = vmul.f32 %v55, %v80
    %v89 = vmul.f32 %v58, %v80
    %v90 = vmul.f32 %v61, %v80
    %v91 = vmul.f32 %v64, %v80
    %v92 = vmul.f32 %v67, %v80
    %v93 = vmul.f32 %v70, %v80
    %v94 = vmul.f32 %v73, %v80
    %v95 = vmul.f32 %v76, %v80
    %v96 = vmul.f32 %v79, %v80
    %v97 = vsub.f32 %v15, %v81
    %v98 = vsub.f32 %v16, %v82
    %v99 = vsub.f32 %v17, %v83
    %v100 = vsub.f32 %v18, %v84
    %v101 = vsub.f32 %v19, %v85
    %v102 = vsub.f32 %v20, %v86
    %v103 = vsub.f32 %v21, %v87
    %v104 = vsub.f32 %v22, %v88
    %v105 = vsub.f32 %v23, %v89
    %v106 = vsub.f32 %v24, %v90
    %v107 = vsub.f32 %v25, %v91
    %v108 = vsub.f32 %v26, %v92
    %v109 = vsub.f32 %v27, %v93
    %v110 = vsub.f32 %v28, %v94
    %v111 = vsub.f32 %v29, %v95
    %v112 = vsub.f32 %v30, %v96
    %v113 = vmul.f32 %v97, %v97
    %v114 = vmul.f32 %v98, %v98
    %v115 = vmul.f32 %v99, %v99
    %v116 = vmul.f32 %v100, %v100
    %v117 = vmul.f32 %v101, %v101
    %v118 = vmul.f32 %v102, %v102
    %v119 = vmul.f32 %v103, %v103
    %v120 = vmul.f32 %v104, %v104
    %v121 = vmul.f32 %v105, %v105
    %v122 = vmul.f32 %v106, %v106
    %v123 = vmul.f32 %v107, %v107
    %v124 = vmul.f32 %v108, %v108
    %v125 = vmul.f32 %v109, %v109
    %v126 = vmul.f32 %v110, %v110
    %v127 = vmul.f32 %v111, %v111
    %v128 = vmul.f32 %v112, %v112
    %v129 = vsel %vm31, %v113, 0.0
    %130 = vadd.xlane.f32.xlu0 %v129
    %v131 = vpop.xlane.xlu0 %130
    %v132 = vsel %vm31, %v114, 0.0
    %133 = vadd.xlane.f32.xlu0 %v132
    %v134 = vpop.xlane.xlu0 %133
    %v135 = vsel %vm31, %v115, 0.0
    %136 = vadd.xlane.f32.xlu0 %v135
    %v137 = vpop.xlane.xlu0 %136
    %v138 = vsel %vm31, %v116, 0.0
    %139 = vadd.xlane.f32.xlu0 %v138
    %v140 = vpop.xlane.xlu0 %139
    %v141 = vsel %vm31, %v117, 0.0
    %142 = vadd.xlane.f32.xlu0 %v141
    %v143 = vpop.xlane.xlu0 %142
    %v144 = vsel %vm31, %v118, 0.0
    %145 = vadd.xlane.f32.xlu0 %v144
    %v146 = vpop.xlane.xlu0 %145
    %v147 = vsel %vm31, %v119, 0.0
    %148 = vadd.xlane.f32.xlu0 %v147
    %v149 = vpop.xlane.xlu0 %148
    %v150 = vsel %vm31, %v120, 0.0
    %151 = vadd.xlane.f32.xlu0 %v150
    %v152 = vpop.xlane.xlu0 %151
    %v153 = vsel %vm31, %v121, 0.0
    %154 = vadd.xlane.f32.xlu0 %v153
    %v155 = vpop.xlane.xlu0 %154
    %v156 = vsel %vm31, %v122, 0.0
    %157 = vadd.xlane.f32.xlu0 %v156
    %v158 = vpop.xlane.xlu0 %157
    %v159 = vsel %vm31, %v123, 0.0
    %160 = vadd.xlane.f32.xlu0 %v159
    %v161 = vpop.xlane.xlu0 %160
    %v162 = vsel %vm31, %v124, 0.0
    %163 = vadd.xlane.f32.xlu0 %v162
    %v164 = vpop.xlane.xlu0 %163
    %v165 = vsel %vm31, %v125, 0.0
    %166 = vadd.xlane.f32.xlu0 %v165
    %v167 = vpop.xlane.xlu0 %166
    %v168 = vsel %vm31, %v126, 0.0
    %169 = vadd.xlane.f32.xlu0 %v168
    %v170 = vpop.xlane.xlu0 %169
    %v171 = vsel %vm31, %v127, 0.0
    %172 = vadd.xlane.f32.xlu0 %v171
    %v173 = vpop.xlane.xlu0 %172
    %v174 = vsel %vm31, %v128, 0.0
    %175 = vadd.xlane.f32.xlu0 %v174
    %v176 = vpop.xlane.xlu0 %175
    %v177 = vmul.f32 %v131, %v80
    %v178 = vmul.f32 %v134, %v80
    %v179 = vmul.f32 %v137, %v80
    %v180 = vmul.f32 %v140, %v80
    %v181 = vmul.f32 %v143, %v80
    %v182 = vmul.f32 %v146, %v80
    %v183 = vmul.f32 %v149, %v80
    %v184 = vmul.f32 %v152, %v80
    %v185 = vmul.f32 %v155, %v80
    %v186 = vmul.f32 %v158, %v80
    %v187 = vmul.f32 %v161, %v80
    %v188 = vmul.f32 %v164, %v80
    %v189 = vmul.f32 %v167, %v80
    %v190 = vmul.f32 %v170, %v80
    %v191 = vmul.f32 %v173, %v80
    %v192 = vmul.f32 %v176, %v80
    %v193 = vadd.f32 %v177, 1e-05
    %v194 = vadd.f32 %v178, 1e-05
    %v195 = vadd.f32 %v179, 1e-05
    %v196 = vadd.f32 %v180, 1e-05
    %v197 = vadd.f32 %v181, 1e-05
    %v198 = vadd.f32 %v182, 1e-05
    %v199 = vadd.f32 %v183, 1e-05
    %v200 = vadd.f32 %v184, 1e-05
    %v201 = vadd.f32 %v185, 1e-05
    %v202 = vadd.f32 %v186, 1e-05
    %v203 = vadd.f32 %v187, 1e-05
    %v204 = vadd.f32 %v188, 1e-05
    %v205 = vadd.f32 %v189, 1e-05
    %v206 = vadd.f32 %v190, 1e-05
    %v207 = vadd.f32 %v191, 1e-05
    %v208 = vadd.f32 %v192, 1e-05
    %v209 = vrsqrt.pop %v193
    %v210 = vrsqrt.pop %v194
    %v211 = vrsqrt.pop %v195
    %v212 = vrsqrt.pop %v196
    %v213 = vrsqrt.pop %v197
    %v214 = vrsqrt.pop %v198
    %v215 = vrsqrt.pop %v199
    %v216 = vrsqrt.pop %v200
    %v217 = vrsqrt.pop %v201
    %v218 = vrsqrt.pop %v202
    %v219 = vrsqrt.pop %v203
    %v220 = vrsqrt.pop %v204
    %v221 = vrsqrt.pop %v205
    %v222 = vrsqrt.pop %v206
    %v223 = vrsqrt.pop %v207
    %v224 = vrsqrt.pop %v208
    %v225 = vmul.f32 %v97, %v209
    %v226 = vmul.f32 %v98, %v210
    %v227 = vmul.f32 %v99, %v211
    %v228 = vmul.f32 %v100, %v212
    %v229 = vmul.f32 %v101, %v213
    %v230 = vmul.f32 %v102, %v214
    %v231 = vmul.f32 %v103, %v215
    %v232 = vmul.f32 %v104, %v216
    %v233 = vmul.f32 %v105, %v217
    %v234 = vmul.f32 %v106, %v218
    %v235 = vmul.f32 %v107, %v219
    %v236 = vmul.f32 %v108, %v220
    %v237 = vmul.f32 %v109, %v221
    %v238 = vmul.f32 %v110, %v222
    %v239 = vmul.f32 %v111, %v223
    %v240 = vmul.f32 %v112, %v224
    %v241 = vld [vmem:[%s1] sm:$0xff]
    %v242 = vld [vmem:[%s1 + $0x8] sm:$0xff]
    %v243 = vld [vmem:[%s2] sm:$0x1]
    %v245 = vlaneseq
    %v246 = vshrl.u32 %v245, 7
    %v247 = vsub.s32 0, %v246
    %v248 = vrot.slane %v243, %v247
    %v251 = vsel %vm31, %v225, 0
    %v254 = vsel %vm31, %v226, 0
    %v257 = vsel %vm31, %v227, 0
    %v260 = vsel %vm31, %v228, 0
    %v263 = vsel %vm31, %v229, 0
    %v266 = vsel %vm31, %v230, 0
    %v269 = vsel %vm31, %v231, 0
    %v272 = vsel %vm31, %v232, 0
    %v275 = vsel %vm31, %v233, 0
    %v278 = vsel %vm31, %v234, 0
    %v281 = vsel %vm31, %v235, 0
    %v284 = vsel %vm31, %v236, 0
    %v287 = vsel %vm31, %v237, 0
    %v290 = vsel %vm31, %v238, 0
    %v293 = vsel %vm31, %v239, 0
    %v296 = vsel %vm31, %v240, 0
    %298 = vmatprep.subr.mxu0 0.0
    %299 = vmatpush1.msra.mxu0 0.0
    %300 = vmatprep.subr.mxu0 0.0
    %301 = vmatpush1.msra.mxu0 0.0
    %302 = vmatprep.subr.mxu0 0.0
    %303 = vmatpush1.msra.mxu0 0.0
    %304 = vmatprep.subr.mxu0 0.0
    %305 = vmatpush1.msra.mxu0 0.0
    %306 = vmatprep.subr.mxu0 0.0
    %307 = vmatpush1.msra.mxu0 0.0
    %308 = vmatprep.subr.mxu0 0.0
    %309 = vmatpush1.msra.mxu0 0.0
    %310 = vmatprep.subr.mxu0 0.0
    %311 = vmatpush1.msra.mxu0 0.0
    %312 = vmatprep.subr.mxu0 0.0
    %313 = vmatpush1.msra.mxu0 0.0
    %314 = vmatprep.subr.mxu0 0.0
    %315 = vmatpush1.msra.mxu0 0.0
    %316 = vmatprep.subr.mxu0 0.0
    %317 = vmatpush1.msra.mxu0 0.0
    %318 = vmatprep.subr.mxu0 0.0
    %319 = vmatpush1.msra.mxu0 0.0
    %320 = vmatprep.subr.mxu0 0.0
    %321 = vmatpush1.msra.mxu0 0.0
    %322 = vmatprep.subr.mxu0 0.0
    %323 = vmatpush1.msra.mxu0 0.0
    %324 = vmatprep.subr.mxu0 0.0
    %325 = vmatpush1.msra.mxu0 0.0
    %326 = vmatprep.subr.mxu0 0.0
    %327 = vmatpush1.msra.mxu0 %v242
    %328 = vmatprep.subr.mxu0 0.0
    %329 = vmatpush1.msra.mxu0 %v241
    %330 = vmatprep.subr.mxu0 0.0
    %331 = vmatpush2.msra.mxu0 0.0
    %332 = vmatprep.subr.mxu0 0.0
    %333 = vmatpush2.msra.mxu0 0.0
    %334 = vmatprep.subr.mxu0 0.0
    %335 = vmatpush2.msra.mxu0 0.0
    %336 = vmatprep.subr.mxu0 0.0
    %337 = vmatpush2.msra.mxu0 0.0
    %338 = vmatprep.subr.mxu0 0.0
    %339 = vmatpush2.msra.mxu0 0.0
    %340 = vmatprep.subr.mxu0 0.0
    %341 = vmatpush2.msra.mxu0 0.0
    %342 = vmatprep.subr.mxu0 0.0
    %343 = vmatpush2.msra.mxu0 0.0
    %344 = vmatprep.subr.mxu0 0.0
    %345 = vmatpush2.msra.mxu0 0.0
    %346 = vmatprep.subr.mxu0 0.0
    %347 = vmatpush2.msra.mxu0 0.0
    %348 = vmatprep.subr.mxu0 0.0
    %349 = vmatpush2.msra.mxu0 0.0
    %350 = vmatprep.subr.mxu0 0.0
    %351 = vmatpush2.msra.mxu0 0.0
    %352 = vmatprep.subr.mxu0 0.0
    %353 = vmatpush2.msra.mxu0 0.0
    %354 = vmatprep.subr.mxu0 0.0
    %355 = vmatpush2.msra.mxu0 0.0
    %356 = vmatprep.subr.mxu0 0.0
    %357 = vmatpush2.msra.mxu0 0.0
    %358 = vmatprep.subr.mxu0 0.0
    %359 = vmatpush2.msra.mxu0 0.0
    %360 = vmatprep.subr.mxu0 0.0
    %361 = vmatpush2.msra.mxu0 0.0
    %362 = vmatprep.mubr.f32.mxu0 0.0
    %363 = vmatmul.mubr.f32.gmra.mxu0 %v251
    %v364 = vpop.f32.mrf.mxu0
    %v365 = vadd.f32 %v248, %v364
    %v366 = vpop.f32.mrf.mxu0
    %367 = vmatprep.mubr.f32.mxu0 0.0
    %368 = vmatmul.mubr.f32.gmra.mxu0 %v254
    %v369 = vpop.f32.mrf.mxu0
    %v370 = vadd.f32 %v248, %v369
    %v371 = vpop.f32.mrf.mxu0
    %372 = vmatprep.mubr.f32.mxu0 0.0
    %373 = vmatmul.mubr.f32.gmra.mxu0 %v257
    %v374 = vpop.f32.mrf.mxu0
    %v375 = vadd.f32 %v248, %v374
    %v376 = vpop.f32.mrf.mxu0
    %377 = vmatprep.mubr.f32.mxu0 0.0
    %378 = vmatmul.mubr.f32.gmra.mxu0 %v260
    %v379 = vpop.f32.mrf.mxu0
    %v380 = vadd.f32 %v248, %v379
    %v381 = vpop.f32.mrf.mxu0
    %382 = vmatprep.mubr.f32.mxu0 0.0
    %383 = vmatmul.mubr.f32.gmra.mxu0 %v263
    %v384 = vpop.f32.mrf.mxu0
    %v385 = vadd.f32 %v248, %v384
    %v386 = vpop.f32.mrf.mxu0
    %387 = vmatprep.mubr.f32.mxu0 0.0
    %388 = vmatmul.mubr.f32.gmra.mxu0 %v266
    %v389 = vpop.f32.mrf.mxu0
    %v390 = vadd.f32 %v248, %v389
    %v391 = vpop.f32.mrf.mxu0
    %392 = vmatprep.mubr.f32.mxu0 0.0
    %393 = vmatmul.mubr.f32.gmra.mxu0 %v269
    %v394 = vpop.f32.mrf.mxu0
    %v395 = vadd.f32 %v248, %v394
    %v396 = vpop.f32.mrf.mxu0
    %397 = vmatprep.mubr.f32.mxu0 0.0
    %398 = vmatmul.mubr.f32.gmra.mxu0 %v272
    %v399 = vpop.f32.mrf.mxu0
    %v400 = vadd.f32 %v248, %v399
    %v401 = vpop.f32.mrf.mxu0
    %402 = vmatprep.mubr.f32.mxu0 0.0
    %403 = vmatmul.mubr.f32.gmra.mxu0 %v275
    %v404 = vpop.f32.mrf.mxu0
    %v405 = vadd.f32 %v248, %v404
    %v406 = vpop.f32.mrf.mxu0
    %407 = vmatprep.mubr.f32.mxu0 0.0
    %408 = vmatmul.mubr.f32.gmra.mxu0 %v278
    %v409 = vpop.f32.mrf.mxu0
    %v410 = vadd.f32 %v248, %v409
    %v411 = vpop.f32.mrf.mxu0
    %412 = vmatprep.mubr.f32.mxu0 0.0
    %413 = vmatmul.mubr.f32.gmra.mxu0 %v281
    %v414 = vpop.f32.mrf.mxu0
    %v415 = vadd.f32 %v248, %v414
    %v416 = vpop.f32.mrf.mxu0
    %417 = vmatprep.mubr.f32.mxu0 0.0
    %418 = vmatmul.mubr.f32.gmra.mxu0 %v284
    %v419 = vpop.f32.mrf.mxu0
    %v420 = vadd.f32 %v248, %v419
    %v421 = vpop.f32.mrf.mxu0
    %422 = vmatprep.mubr.f32.mxu0 0.0
    %423 = vmatmul.mubr.f32.gmra.mxu0 %v287
    %v424 = vpop.f32.mrf.mxu0
    %v425 = vadd.f32 %v248, %v424
    %v426 = vpop.f32.mrf.mxu0
    %427 = vmatprep.mubr.f32.mxu0 0.0
    %428 = vmatmul.mubr.f32.gmra.mxu0 %v290
    %v429 = vpop.f32.mrf.mxu0
    %v430 = vadd.f32 %v248, %v429
    %v431 = vpop.f32.mrf.mxu0
    %432 = vmatprep.mubr.f32.mxu0 0.0
    %433 = vmatmul.mubr.f32.gmra.mxu0 %v293
    %v434 = vpop.f32.mrf.mxu0
    %v435 = vadd.f32 %v248, %v434
    %v436 = vpop.f32.mrf.mxu0
    %437 = vmatprep.mubr.f32.mxu0 0.0
    %438 = vmatmul.mubr.f32.gmra.mxu0 %v296
    %v439 = vpop.f32.mrf.mxu0
    %v440 = vadd.f32 %v248, %v439
    %v441 = vpop.f32.mrf.mxu0
    %442 = vdwg.mxu0
    %443 = vst [vmem:[#allocation2] sm:$0xff] %v365
    %444 = vst [vmem:[#allocation2 + $0x8] sm:$0xff] %v370
    %445 = vst [vmem:[#allocation2 + $0x10] sm:$0xff] %v375
    %446 = vst [vmem:[#allocation2 + $0x18] sm:$0xff] %v380
    %447 = vst [vmem:[#allocation2 + $0x20] sm:$0xff] %v385
    %448 = vst [vmem:[#allocation2 + $0x28] sm:$0xff] %v390
    %449 = vst [vmem:[#allocation2 + $0x30] sm:$0xff] %v395
    %450 = vst [vmem:[#allocation2 + $0x38] sm:$0xff] %v400
    %451 = vst [vmem:[#allocation2 + $0x40] sm:$0xff] %v405
    %452 = vst [vmem:[#allocation2 + $0x48] sm:$0xff] %v410
    %453 = vst [vmem:[#allocation2 + $0x50] sm:$0xff] %v415
    %454 = vst [vmem:[#allocation2 + $0x58] sm:$0xff] %v420
    %455 = vst [vmem:[#allocation2 + $0x60] sm:$0xff] %v425
    %456 = vst [vmem:[#allocation2 + $0x68] sm:$0xff] %v430
    %457 = vst [vmem:[#allocation2 + $0x70] sm:$0xff] %v435
    %458 = vst [vmem:[#allocation2 + $0x78] sm:$0xff] %v440
    // Predicated region
    $region14: #{tpu_custom_call.1} parent=1 // pred_check
      _
    $region15: #{tpu_custom_call.1} parent=1 // pred_check_branch
      %460 = sbr.rel (0) target = $region17
    $region16: #{tpu_custom_call.1} parent=1 // pred_region
      %s462 = ssub.s32 2048, 2048
      %463 = vsyncadd [#allocation3], %s462
      %s464 = sshll.u32 [#allocation2], 4
      %s465 = int_to_ptr.vmem [resolvable:$true] %s464
      %470 = dma.vmem_to_hbm [thread:$0]  %s465, 2048, %s3, [#allocation3], 128, 128, 8
    $region17: #{tpu_custom_call.1} parent=1 // pred_fallthru
      _
    // Predicated region
    $region18: #{tpu_custom_call.1} parent=1 // pred_check
      _
    $region19: #{tpu_custom_call.1} parent=1 // pred_check_branch
      %472 = sbr.rel (0) target = $region21
    $region20: #{tpu_custom_call.1} parent=1 // pred_region
      %473 = dma.done [#allocation3], 2048
    $region21: #{tpu_custom_call.1} parent=1 // pred_fallthru
      _
    %474 = vsyncpa [#allocation3], 1

</llo_original>
